<compile_context>
chip_gen: v7x
topology: tpu7x:2x2x1
jax: 0.10.0
libtpu: 0.0.40
codegen_flags: <defaults>
</compile_context>

<pallas_src>
import jax
import jax.numpy as jnp
from jax.experimental import pallas as pl
from jax.experimental.pallas import tpu as pltpu

# ----------------- config (small, consistent with the module) -----------------
B = 2                      # batch
C = 4                      # enc_in (n_vars)
L = 32                     # seq_len
PRED = 8                   # pred_len
D_MODEL = 32               # d_model
PATCH_LEN = 16
STRIDE = 8
PADDING = STRIDE
PATCH_NUM = int((L - PATCH_LEN) / STRIDE + 2)   # = 4 (as in Model.__init__)
HEAD_NF = D_MODEL * PATCH_NUM                   # = 128
EPS = 1e-5
LP = L + PADDING                                # padded series length


# ----------------- single fused kernel -----------------
def _cmamba_kernel(x_ref, w_ref, b_ref, o_ref):
    # x_ref : [B, L, C]      raw input series
    # w_ref : [PRED, L]      folded (pad+patch+embed+head) weight, pre-transposed
    # b_ref : [PRED, 1]      folded bias (pos-embedding + head bias), scaled by std in-kernel
    # o_ref : [B, PRED, C]   final de-normalized forecast
    w_t = w_ref[...]                                     # [PRED, L]
    bias = b_ref[...]                                    # [PRED, 1]
    for b in range(B):                                   # static unroll (B = 2)
        xb = x_ref[b]                                    # [L, C]
        mean = jnp.mean(xb, axis=0, keepdims=True)       # [1, C]  (stats over time, per channel)
        xc = xb - mean
        var = jnp.mean(xc * xc, axis=0, keepdims=True)   # unbiased=False
        std = jnp.sqrt(var + EPS)                        # [1, C]
        # norm divide cancels against de-norm multiply on the linear path:
        #   dec = (x - mean) @ W_fold + std * bias_fold + mean
        y = jnp.dot(w_t, xc, preferred_element_type=jnp.float32)   # [PRED, C]
        # TODO(synk): CMambaEncoder (Mamba SSM blocks) not provided upstream; treated as identity
        #             (the W_fold/std-cancellation folds are only valid while it stays identity).
        o_ref[b] = y + std * bias + mean                 # [PRED, C]


def cmamba_forward(x_enc, w_fold_t, bias_fold):
    return pl.pallas_call(
        _cmamba_kernel,
        out_shape=jax.ShapeDtypeStruct((B, PRED, C), jnp.float32),
        in_specs=[
            pl.BlockSpec(memory_space=pltpu.MemorySpace.VMEM),
            pl.BlockSpec(memory_space=pltpu.MemorySpace.VMEM),
            pl.BlockSpec(memory_space=pltpu.MemorySpace.VMEM),
        ],
        out_specs=pl.BlockSpec(memory_space=pltpu.MemorySpace.VMEM),
    )(x_enc, w_fold_t, bias_fold)
    # Scaling note (v7x): if B*C grows, add a leading "parallel" grid axis over row tiles
    # so both TensorCores are used; size tiles against the ~32 MiB scoped-VMEM default.


# ----------------- deterministic parameters & algebraic fold -----------------
def positional_embedding(d_model, max_len):
    pos = jnp.arange(max_len, dtype=jnp.float32)[:, None]
    div = jnp.exp(
        jnp.arange(0, d_model, 2, dtype=jnp.float32) * -(jnp.log(10000.0) / d_model)
    )
    pe = jnp.zeros((max_len, d_model), jnp.float32)
    pe = pe.at[:, 0::2].set(jnp.sin(pos * div))
    pe = pe.at[:, 1::2].set(jnp.cos(pos * div))
    return pe


def init_params():
    key = jax.random.PRNGKey(0)
    k1, k2, k3 = jax.random.split(key, 3)
    # PatchEmbedding.value_embedding: Linear(patch_len, d_model, bias=False) -> weight [d_model, patch_len]
    w_emb = jax.random.normal(k1, (D_MODEL, PATCH_LEN), jnp.float32) * 0.1
    # FlattenHead.linear: Linear(head_nf, pred_len) -> weight [pred_len, head_nf], bias [pred_len]
    w_head = jax.random.normal(k2, (PRED, HEAD_NF), jnp.float32) * 0.05
    b_head = jax.random.normal(k3, (PRED,), jnp.float32) * 0.01
    pos = positional_embedding(D_MODEL, PATCH_NUM)                  # [patch_num, d_model]

    w_emb_t = w_emb.T                                               # [patch_len, d_model]
    # Flatten(start_dim=-2) of [.., d_model, patch_num] -> flat index d*patch_num + p
    w_head_p = w_head.T.reshape(D_MODEL, PATCH_NUM, PRED).transpose(1, 0, 2)  # [P, D, PRED]

    # Per-patch folded blocks: M_p = W_emb^T @ W_head_p  -> [P, PATCH_LEN, PRED]
    m = jnp.einsum('ld,pdt->plt', w_emb_t, w_head_p)
    # Scatter-add patch blocks onto the padded time axis
    w_full = jnp.zeros((LP, PRED), jnp.float32)
    for p in range(PATCH_NUM):
        w_full = w_full.at[p * STRIDE: p * STRIDE + PATCH_LEN].add(m[p])
    # Replication-pad columns read the (normalized) last value -> fold their weight into row L-1
    w_fold = w_full[:L].at[L - 1].add(jnp.sum(w_full[L:], axis=0))  # [L, PRED]
    # Positional embedding + head bias fold into a single bias vector
    bias_fold = jnp.einsum('pd,pdt->t', pos, w_head_p) + b_head     # [PRED]

    return {
        "w_fold_t": w_fold.T,                        # [PRED, L]  (lane axis = L = 32)
        "bias_fold": bias_fold.reshape(PRED, 1),     # [PRED, 1]
        # kept for the pure-JAX reference check
        "_raw": (w_emb_t, pos, w_head_p, b_head),
    }


# ----------------- full forward (mirrors Model.forward) -----------------
def model_forward(x_enc, x_mark_enc, x_dec, x_mark_dec, params):
    del x_mark_enc, x_dec, x_mark_dec   # unused by the PyTorch forward as well
    return cmamba_forward(x_enc, params["w_fold_t"], params["bias_fold"])


# ----------------- pure-JAX unfused reference (for validation) -----------------
def reference_forward(x_enc, raw):
    w_emb_t, pos, w_head_p, b_head = raw
    mean = jnp.mean(x_enc, axis=1, keepdims=True)                    # [B,1,C]
    xc = x_enc - mean
    std = jnp.sqrt(jnp.mean(xc * xc, axis=1, keepdims=True) + EPS)   # [B,1,C]
    xn = xc / std
    xn = jnp.transpose(xn, (0, 2, 1)).reshape(B * C, L)
    xp = jnp.concatenate([xn, jnp.repeat(xn[:, -1:], PADDING, axis=-1)], axis=-1)
    y = jnp.zeros((B * C, PRED), jnp.float32)
    for p in range(PATCH_NUM):
        patch = xp[:, p * STRIDE: p * STRIDE + PATCH_LEN]
        emb = patch @ w_emb_t + pos[p:p + 1]
        y = y + emb @ w_head_p[p]
    y = y + b_head[None, :]
    y = jnp.transpose(y.reshape(B, C, PRED), (0, 2, 1))              # [B, PRED, C]
    return y * std + mean


if __name__ == "__main__":
    params = init_params()
    key = jax.random.PRNGKey(0)
    kx, km, kd, kmd = jax.random.split(key, 4)
    x_enc = jax.random.normal(kx, (B, L, C), jnp.float32)
    x_mark_enc = jax.random.normal(km, (B, L, C), jnp.float32)
    x_dec = jax.random.normal(kd, (B, PRED, C), jnp.float32)
    x_mark_dec = jax.random.normal(kmd, (B, PRED, C), jnp.float32)

    fwd = jax.jit(lambda xe: model_forward(xe, x_mark_enc, x_dec, x_mark_dec, params))
    out = jax.block_until_ready(fwd(x_enc))

    ref = reference_forward(x_enc, params["_raw"])
    assert out.shape == (B, PRED, C)
    assert bool(jnp.all(jnp.isfinite(out)))
    assert bool(jnp.allclose(out, ref, rtol=2e-3, atol=2e-3))
    print("KERNEL_OK")
</pallas_src>

<mosaic_0001>
module attributes {stable_mosaic.version = 11 : i64} {
  func.func @_cmamba_kernel(%arg0: memref<2x32x4xf32, #tpu.memory_space<vmem>>, %arg1: memref<8x32xf32, #tpu.memory_space<vmem>>, %arg2: memref<8x1xf32, #tpu.memory_space<vmem>>, %arg3: memref<2x8x4xf32, #tpu.memory_space<vmem>>) attributes {dimension_semantics = [], scalar_prefetch = 0 : i64, scratch_operands = 0 : i64, tpu.core_type = #tpu.core_type<tc>} {
    %c0 = arith.constant 0 : index
    %c0_0 = arith.constant 0 : index
    %0 = vector.load %arg1[%c0, %c0_0] : memref<8x32xf32, #tpu.memory_space<vmem>>, vector<8x32xf32>
    %c0_1 = arith.constant 0 : index
    %c0_2 = arith.constant 0 : index
    %1 = vector.load %arg2[%c0_1, %c0_2] : memref<8x1xf32, #tpu.memory_space<vmem>>, vector<8x1xf32>
    %c0_3 = arith.constant 0 : index
    %c0_4 = arith.constant 0 : index
    %c0_5 = arith.constant 0 : index
    %2 = vector.load %arg0[%c0_3, %c0_4, %c0_5] : memref<2x32x4xf32, #tpu.memory_space<vmem>>, vector<1x32x4xf32>
    %3 = vector.shape_cast %2 : vector<1x32x4xf32> to vector<32x4xf32>
    %cst = arith.constant dense<0.000000e+00> : vector<4xf32>
    %4 = vector.multi_reduction <add>, %3, %cst [0] : vector<32x4xf32> to vector<4xf32>
    %5 = vector.shape_cast %4 : vector<4xf32> to vector<1x4xf32>
    %cst_6 = arith.constant 3.200000e+01 : f32
    %6 = vector.broadcast %cst_6 : f32 to vector<1x4xf32>
    %7 = arith.divf %5, %6 : vector<1x4xf32>
    %8 = vector.broadcast %7 : vector<1x4xf32> to vector<32x4xf32>
    %9 = arith.subf %3, %8 : vector<32x4xf32>
    %10 = arith.mulf %9, %9 : vector<32x4xf32>
    %cst_7 = arith.constant dense<0.000000e+00> : vector<4xf32>
    %11 = vector.multi_reduction <add>, %10, %cst_7 [0] : vector<32x4xf32> to vector<4xf32>
    %12 = vector.shape_cast %11 : vector<4xf32> to vector<1x4xf32>
    %cst_8 = arith.constant 3.200000e+01 : f32
    %13 = vector.broadcast %cst_8 : f32 to vector<1x4xf32>
    %14 = arith.divf %12, %13 : vector<1x4xf32>
    %cst_9 = arith.constant 9.99999974E-6 : f32
    %15 = vector.broadcast %cst_9 : f32 to vector<1x4xf32>
    %16 = arith.addf %14, %15 : vector<1x4xf32>
    %17 = math.sqrt %16 : vector<1x4xf32>
    %cst_10 = arith.constant dense<0.000000e+00> : vector<8x4xf32>
    %18 = tpu.matmul %0, %9, %cst_10 {dimension_numbers = #tpu.dot_dimension_numbers<[1], [0], [0], [1], [0, 0, 1, 1], [], []>} : vector<8x32xf32>, vector<32x4xf32>, vector<8x4xf32> -> vector<8x4xf32>
    %19 = vector.broadcast %17 : vector<1x4xf32> to vector<8x4xf32>
    %20 = vector.broadcast %1 : vector<8x1xf32> to vector<8x4xf32>
    %21 = arith.mulf %19, %20 : vector<8x4xf32>
    %22 = arith.addf %18, %21 : vector<8x4xf32>
    %23 = vector.broadcast %7 : vector<1x4xf32> to vector<8x4xf32>
    %24 = arith.addf %22, %23 : vector<8x4xf32>
    %c0_11 = arith.constant 0 : index
    %c0_12 = arith.constant 0 : index
    %c0_13 = arith.constant 0 : index
    %25 = vector.load %arg3[%c0_11, %c0_12, %c0_13] : memref<2x8x4xf32, #tpu.memory_space<vmem>>, vector<1x8x4xf32>
    %26 = vector.shape_cast %25 : vector<1x8x4xf32> to vector<8x4xf32>
    %27 = vector.shape_cast %24 : vector<8x4xf32> to vector<1x8x4xf32>
    tpu.vector_store %arg3[%c0_11, %c0_12, %c0_13], %27 {strides = array<i32>} : memref<2x8x4xf32, #tpu.memory_space<vmem>>, vector<1x8x4xf32>,
    %c1 = arith.constant 1 : index
    %c0_14 = arith.constant 0 : index
    %c0_15 = arith.constant 0 : index
    %28 = vector.load %arg0[%c1, %c0_14, %c0_15] : memref<2x32x4xf32, #tpu.memory_space<vmem>>, vector<1x32x4xf32>
    %29 = vector.shape_cast %28 : vector<1x32x4xf32> to vector<32x4xf32>
    %cst_16 = arith.constant dense<0.000000e+00> : vector<4xf32>
    %30 = vector.multi_reduction <add>, %29, %cst_16 [0] : vector<32x4xf32> to vector<4xf32>
    %31 = vector.shape_cast %30 : vector<4xf32> to vector<1x4xf32>
    %cst_17 = arith.constant 3.200000e+01 : f32
    %32 = vector.broadcast %cst_17 : f32 to vector<1x4xf32>
    %33 = arith.divf %31, %32 : vector<1x4xf32>
    %34 = vector.broadcast %33 : vector<1x4xf32> to vector<32x4xf32>
    %35 = arith.subf %29, %34 : vector<32x4xf32>
    %36 = arith.mulf %35, %35 : vector<32x4xf32>
    %cst_18 = arith.constant dense<0.000000e+00> : vector<4xf32>
    %37 = vector.multi_reduction <add>, %36, %cst_18 [0] : vector<32x4xf32> to vector<4xf32>
    %38 = vector.shape_cast %37 : vector<4xf32> to vector<1x4xf32>
    %cst_19 = arith.constant 3.200000e+01 : f32
    %39 = vector.broadcast %cst_19 : f32 to vector<1x4xf32>
    %40 = arith.divf %38, %39 : vector<1x4xf32>
    %cst_20 = arith.constant 9.99999974E-6 : f32
    %41 = vector.broadcast %cst_20 : f32 to vector<1x4xf32>
    %42 = arith.addf %40, %41 : vector<1x4xf32>
    %43 = math.sqrt %42 : vector<1x4xf32>
    %cst_21 = arith.constant dense<0.000000e+00> : vector<8x4xf32>
    %44 = tpu.matmul %0, %35, %cst_21 {dimension_numbers = #tpu.dot_dimension_numbers<[1], [0], [0], [1], [0, 0, 1, 1], [], []>} : vector<8x32xf32>, vector<32x4xf32>, vector<8x4xf32> -> vector<8x4xf32>
    %45 = vector.broadcast %43 : vector<1x4xf32> to vector<8x4xf32>
    %46 = vector.broadcast %1 : vector<8x1xf32> to vector<8x4xf32>
    %47 = arith.mulf %45, %46 : vector<8x4xf32>
    %48 = arith.addf %44, %47 : vector<8x4xf32>
    %49 = vector.broadcast %33 : vector<1x4xf32> to vector<8x4xf32>
    %50 = arith.addf %48, %49 : vector<8x4xf32>
    %c1_22 = arith.constant 1 : index
    %c0_23 = arith.constant 0 : index
    %c0_24 = arith.constant 0 : index
    %51 = vector.load %arg3[%c1_22, %c0_23, %c0_24] : memref<2x8x4xf32, #tpu.memory_space<vmem>>, vector<1x8x4xf32>
    %52 = vector.shape_cast %51 : vector<1x8x4xf32> to vector<8x4xf32>
    %53 = vector.shape_cast %50 : vector<8x4xf32> to vector<1x8x4xf32>
    tpu.vector_store %arg3[%c1_22, %c0_23, %c0_24], %53 {strides = array<i32>} : memref<2x8x4xf32, #tpu.memory_space<vmem>>, vector<1x8x4xf32>,
    return
  }
}

</mosaic_0001>

<llo_original>
// kernel: _lambda_.1
$region0: #{_lambda_.1}
  #allocation0 [shape = 'u32[]', space=smem, size = 0x4, offset = 0x4, fixed_abs, tag = 'smem constant byte address 0x4 - core index']
  #allocation1 [shape = 'u32[144,128]{1,0:T(1,128)}', space=vmem, size = 0x12000, scoped, tag = 'internal scratch']
  %s0 = inlined_call_operand.vmem [shape: f32[2,32,4], index: 0, kind: input, shape index: {}]
  %s1 = inlined_call_operand.vmem [shape: f32[8,32], index: 1, kind: input, shape index: {}]
  %s2 = inlined_call_operand.vmem [shape: f32[8,1], index: 2, kind: input, shape index: {}]
  %s3 = inlined_call_operand.vmem [shape: f32[2,8,4], index: 3, kind: output, shape index: {}]
  %s4 = sld [smem:[#allocation0]]
  $region22: #{_lambda_.1} parent=0
    _
  %s6 = ssub.s32 1, %s4
  %s7 = scalar_select 0, %s6, %s4
  // Predicated region
  $region2: #{_lambda_.1} parent=0 // pred_check
    _
  $region3: #{_lambda_.1} parent=0 // pred_check_branch
    %9 = sbr.rel (0) target = $region5
  $region4: #{_lambda_.1} parent=0 // pred_region
    _
  $region5: #{_lambda_.1} parent=0 // pred_fallthru
    _
  // Predicated region
  $region6: #{_lambda_.1} parent=0 // pred_check
    _
  $region7: #{_lambda_.1} parent=0 // pred_check_branch
    %11 = sbr.rel (0) target = $region9
  $region8: #{_lambda_.1} parent=0 // pred_region
    _
  $region9: #{_lambda_.1} parent=0 // pred_fallthru
    _
  // Predicated region
  $region10: #{_lambda_.1} parent=0 // pred_check
    _
  $region11: #{_lambda_.1} parent=0 // pred_check_branch
    %13 = sbr.rel (0) target = $region13
  $region12: #{_lambda_.1} parent=0 // pred_region
    _
  $region13: #{_lambda_.1} parent=0 // pred_fallthru
    _
  %v14 = vld [vmem:[%s1] sm:$0xff]
  %v15 = vld [vmem:[%s2] sm:$0xff]
  %v16 = vld [vmem:[%s0] sm:$0xff]
  %v17 = vld [vmem:[%s0 + $0x8] sm:$0xff]
  %v18 = vld [vmem:[%s0 + $0x10] sm:$0xff]
  %v19 = vld [vmem:[%s0 + $0x18] sm:$0xff]
  %vm20 = vcmask 31744
  %v21 = vsel %vm20, %v16, 0.0
  %v22 = vsel %vm20, %v17, 0.0
  %v23 = vadd.f32 %v21, %v22
  %v24 = vsel %vm20, %v18, 0.0
  %v25 = vadd.f32 %v23, %v24
  %v26 = vsel %vm20, %v19, 0.0
  %v27 = vadd.f32 %v25, %v26
  %v28 = vrot.slane %v27, 4
  %v29 = vadd.f32 %v27, %v28
  %v30 = vrot.slane %v29, 2
  %v31 = vadd.f32 %v29, %v30
  %v32 = vrot.slane %v31, 1
  %v33 = vadd.f32 %v31, %v32
  %v34 = vrcp.pop 32.0
  %v35 = vmul.f32 %v33, %v34
  %v36 = vsub.f32 %v16, %v35
  %v37 = vsub.f32 %v17, %v35
  %v38 = vsub.f32 %v18, %v35
  %v39 = vsub.f32 %v19, %v35
  %v40 = vmul.f32 %v36, %v36
  %v41 = vmul.f32 %v37, %v37
  %v42 = vmul.f32 %v38, %v38
  %v43 = vmul.f32 %v39, %v39
  %v44 = vsel %vm20, %v40, 0.0
  %v45 = vsel %vm20, %v41, 0.0
  %v46 = vadd.f32 %v44, %v45
  %v47 = vsel %vm20, %v42, 0.0
  %v48 = vadd.f32 %v46, %v47
  %v49 = vsel %vm20, %v43, 0.0
  %v50 = vadd.f32 %v48, %v49
  %v51 = vrot.slane %v50, 4
  %v52 = vadd.f32 %v50, %v51
  %v53 = vrot.slane %v52, 2
  %v54 = vadd.f32 %v52, %v53
  %v55 = vrot.slane %v54, 1
  %v56 = vadd.f32 %v54, %v55
  %v57 = vmul.f32 %v56, %v34
  %v58 = vadd.f32 %v57, 1e-05
  %v59 = vrsqrt.pop %v58
  %v60 = vmul.f32 %v58, %v59
  %vm61 = vcmp.eq.f32.partialorder %v58, inf
  %v62 = vsel %vm61, %v58, %v60
  %vm63 = vcmp.eq.f32.partialorder %v58, 0.0
  %v64 = vand.u32 %v58, 2147483648
  %v65 = vsel %vm63, %v64, %v62
  %67 = vset.pattern.permute.xlu0 0
  %68 = vperm.xlu0 %67, %v15
  %v69 = vpop.permute.xlu0 %68
  %v71 = vmul.f32 %v65, %v69
  %vm72 = vcmask 261120
  %v74 = vsel %vm72, %v14, 0
  %76 = vmatprep.subr.mxu0 0.0
  %77 = vmatpush1.msra.mxu0 %v36
  %78 = vmatprep.subr.mxu0 0.0
  %79 = vmatpush1.msra.mxu0 %v37
  %80 = vmatprep.subr.mxu0 0.0
  %81 = vmatpush1.msra.mxu0 %v38
  %82 = vmatprep.subr.mxu0 0.0
  %83 = vmatpush1.msra.mxu0 %v39
  %84 = vmatprep.subr.mxu0 0.0
  %85 = vmatpush1.msra.mxu0 0.0
  %86 = vmatprep.subr.mxu0 0.0
  %87 = vmatpush1.msra.mxu0 0.0
  %88 = vmatprep.subr.mxu0 0.0
  %89 = vmatpush1.msra.mxu0 0.0
  %90 = vmatprep.subr.mxu0 0.0
  %91 = vmatpush1.msra.mxu0 0.0
  %92 = vmatprep.subr.mxu0 0.0
  %93 = vmatpush1.msra.mxu0 0.0
  %94 = vmatprep.subr.mxu0 0.0
  %95 = vmatpush1.msra.mxu0 0.0
  %96 = vmatprep.subr.mxu0 0.0
  %97 = vmatpush1.msra.mxu0 0.0
  %98 = vmatprep.subr.mxu0 0.0
  %99 = vmatpush1.msra.mxu0 0.0
  %100 = vmatprep.subr.mxu0 0.0
  %101 = vmatpush1.msra.mxu0 0.0
  %102 = vmatprep.subr.mxu0 0.0
  %103 = vmatpush1.msra.mxu0 0.0
  %104 = vmatprep.subr.mxu0 0.0
  %105 = vmatpush1.msra.mxu0 0.0
  %106 = vmatprep.subr.mxu0 0.0
  %107 = vmatpush1.msra.mxu0 0.0
  %108 = vmatprep.subr.mxu0 0.0
  %109 = vmatpush1.msra.mxu0 0.0
  %110 = vmatprep.subr.mxu0 0.0
  %111 = vmatpush1.msra.mxu0 0.0
  %112 = vmatprep.subr.mxu0 0.0
  %113 = vmatpush1.msra.mxu0 0.0
  %114 = vmatprep.subr.mxu0 0.0
  %115 = vmatpush1.msra.mxu0 0.0
  %116 = vmatprep.subr.mxu0 0.0
  %117 = vmatpush1.msra.mxu0 0.0
  %118 = vmatprep.subr.mxu0 0.0
  %119 = vmatpush1.msra.mxu0 0.0
  %120 = vmatprep.subr.mxu0 0.0
  %121 = vmatpush1.msra.mxu0 0.0
  %122 = vmatprep.subr.mxu0 0.0
  %123 = vmatpush1.msra.mxu0 0.0
  %124 = vmatprep.subr.mxu0 0.0
  %125 = vmatpush1.msra.mxu0 0.0
  %126 = vmatprep.subr.mxu0 0.0
  %127 = vmatpush1.msra.mxu0 0.0
  %128 = vmatprep.subr.mxu0 0.0
  %129 = vmatpush1.msra.mxu0 0.0
  %130 = vmatprep.subr.mxu0 0.0
  %131 = vmatpush1.msra.mxu0 0.0
  %132 = vmatprep.subr.mxu0 0.0
  %133 = vmatpush1.msra.mxu0 0.0
  %134 = vmatprep.subr.mxu0 0.0
  %135 = vmatpush1.msra.mxu0 0.0
  %136 = vmatprep.subr.mxu0 0.0
  %137 = vmatpush1.msra.mxu0 0.0
  %138 = vmatprep.subr.mxu0 0.0
  %139 = vmatpush1.msra.mxu0 0.0
  %140 = vmatprep.mubr.f32.mxu0 0.0
  %141 = vmatmul.mubr.f32.gmra.mrb[0].mxu0 %v74
  %v142 = vpop.f32.mrb[0].mxu0
  %v143 = vadd.f32 %v71, %v142
  %v144 = vpop.f32.mrb[0].mxu0
  %145 = vdwg.mxu0
  %v146 = vadd.f32 %v143, %v35
  %147 = vst.msk [vmem:[%s3] sm:$0xff] %vm20, %v146
  %s148 = scalar_lea.vmem %s0, 32
  %v149 = vld [vmem:[%s148] sm:$0xff]
  %v150 = vld [vmem:[%s148 + $0x8] sm:$0xff]
  %v151 = vld [vmem:[%s148 + $0x10] sm:$0xff]
  %v152 = vld [vmem:[%s148 + $0x18] sm:$0xff]
  %v153 = vsel %vm20, %v149, 0.0
  %v154 = vsel %vm20, %v150, 0.0
  %v155 = vadd.f32 %v153, %v154
  %v156 = vsel %vm20, %v151, 0.0
  %v157 = vadd.f32 %v155, %v156
  %v158 = vsel %vm20, %v152, 0.0
  %v159 = vadd.f32 %v157, %v158
  %v160 = vrot.slane %v159, 4
  %v161 = vadd.f32 %v159, %v160
  %v162 = vrot.slane %v161, 2
  %v163 = vadd.f32 %v161, %v162
  %v164 = vrot.slane %v163, 1
  %v165 = vadd.f32 %v163, %v164
  %v166 = vmul.f32 %v165, %v34
  %v167 = vsub.f32 %v149, %v166
  %v168 = vsub.f32 %v150, %v166
  %v169 = vsub.f32 %v151, %v166
  %v170 = vsub.f32 %v152, %v166
  %v171 = vmul.f32 %v167, %v167
  %v172 = vmul.f32 %v168, %v168
  %v173 = vmul.f32 %v169, %v169
  %v174 = vmul.f32 %v170, %v170
  %v175 = vsel %vm20, %v171, 0.0
  %v176 = vsel %vm20, %v172, 0.0
  %v177 = vadd.f32 %v175, %v176
  %v178 = vsel %vm20, %v173, 0.0
  %v179 = vadd.f32 %v177, %v178
  %v180 = vsel %vm20, %v174, 0.0
  %v181 = vadd.f32 %v179, %v180
  %v182 = vrot.slane %v181, 4
  %v183 = vadd.f32 %v181, %v182
  %v184 = vrot.slane %v183, 2
  %v185 = vadd.f32 %v183, %v184
  %v186 = vrot.slane %v185, 1
  %v187 = vadd.f32 %v185, %v186
  %v188 = vmul.f32 %v187, %v34
  %v189 = vadd.f32 %v188, 1e-05
  %v190 = vrsqrt.pop %v189
  %v191 = vmul.f32 %v189, %v190
  %vm192 = vcmp.eq.f32.partialorder %v189, inf
  %v193 = vsel %vm192, %v189, %v191
  %vm194 = vcmp.eq.f32.partialorder %v189, 0.0
  %v195 = vand.u32 %v189, 2147483648
  %v196 = vsel %vm194, %v195, %v193
  %v197 = vmul.f32 %v196, %v69
  %198 = vmatprep.subr.mxu0 0.0
  %199 = vmatpush1.msra.mxu0 %v167
  %200 = vmatprep.subr.mxu0 0.0
  %201 = vmatpush1.msra.mxu0 %v168
  %202 = vmatprep.subr.mxu0 0.0
  %203 = vmatpush1.msra.mxu0 %v169
  %204 = vmatprep.subr.mxu0 0.0
  %205 = vmatpush1.msra.mxu0 %v170
  %206 = vmatprep.subr.mxu0 0.0
  %207 = vmatpush1.msra.mxu0 0.0
  %208 = vmatprep.subr.mxu0 0.0
  %209 = vmatpush1.msra.mxu0 0.0
  %210 = vmatprep.subr.mxu0 0.0
  %211 = vmatpush1.msra.mxu0 0.0
  %212 = vmatprep.subr.mxu0 0.0
  %213 = vmatpush1.msra.mxu0 0.0
  %214 = vmatprep.subr.mxu0 0.0
  %215 = vmatpush1.msra.mxu0 0.0
  %216 = vmatprep.subr.mxu0 0.0
  %217 = vmatpush1.msra.mxu0 0.0
  %218 = vmatprep.subr.mxu0 0.0
  %219 = vmatpush1.msra.mxu0 0.0
  %220 = vmatprep.subr.mxu0 0.0
  %221 = vmatpush1.msra.mxu0 0.0
  %222 = vmatprep.subr.mxu0 0.0
  %223 = vmatpush1.msra.mxu0 0.0
  %224 = vmatprep.subr.mxu0 0.0
  %225 = vmatpush1.msra.mxu0 0.0
  %226 = vmatprep.subr.mxu0 0.0
  %227 = vmatpush1.msra.mxu0 0.0
  %228 = vmatprep.subr.mxu0 0.0
  %229 = vmatpush1.msra.mxu0 0.0
  %230 = vmatprep.subr.mxu0 0.0
  %231 = vmatpush1.msra.mxu0 0.0
  %232 = vmatprep.subr.mxu0 0.0
  %233 = vmatpush1.msra.mxu0 0.0
  %234 = vmatprep.subr.mxu0 0.0
  %235 = vmatpush1.msra.mxu0 0.0
  %236 = vmatprep.subr.mxu0 0.0
  %237 = vmatpush1.msra.mxu0 0.0
  %238 = vmatprep.subr.mxu0 0.0
  %239 = vmatpush1.msra.mxu0 0.0
  %240 = vmatprep.subr.mxu0 0.0
  %241 = vmatpush1.msra.mxu0 0.0
  %242 = vmatprep.subr.mxu0 0.0
  %243 = vmatpush1.msra.mxu0 0.0
  %244 = vmatprep.subr.mxu0 0.0
  %245 = vmatpush1.msra.mxu0 0.0
  %246 = vmatprep.subr.mxu0 0.0
  %247 = vmatpush1.msra.mxu0 0.0
  %248 = vmatprep.subr.mxu0 0.0
  %249 = vmatpush1.msra.mxu0 0.0
  %250 = vmatprep.subr.mxu0 0.0
  %251 = vmatpush1.msra.mxu0 0.0
  %252 = vmatprep.subr.mxu0 0.0
  %253 = vmatpush1.msra.mxu0 0.0
  %254 = vmatprep.subr.mxu0 0.0
  %255 = vmatpush1.msra.mxu0 0.0
  %256 = vmatprep.subr.mxu0 0.0
  %257 = vmatpush1.msra.mxu0 0.0
  %258 = vmatprep.subr.mxu0 0.0
  %259 = vmatpush1.msra.mxu0 0.0
  %260 = vmatprep.subr.mxu0 0.0
  %261 = vmatpush1.msra.mxu0 0.0
  %262 = vmatprep.mubr.f32.mxu0 0.0
  %263 = vmatmul.mubr.f32.gmra.mrb[0].mxu0 %v74
  %v264 = vpop.f32.mrb[0].mxu0
  %v265 = vadd.f32 %v197, %v264
  %v266 = vpop.f32.mrb[0].mxu0
  %267 = vdwg.mxu0
  %v268 = vadd.f32 %v265, %v166
  %s269 = scalar_lea.vmem %s3, 8
  %270 = vst.msk [vmem:[%s269] sm:$0xff] %vm20, %v268
  // Predicated region
  $region14: #{_lambda_.1} parent=0 // pred_check
    _
  $region15: #{_lambda_.1} parent=0 // pred_check_branch
    %272 = sbr.rel (0) target = $region17
  $region16: #{_lambda_.1} parent=0 // pred_region
    _
  $region17: #{_lambda_.1} parent=0 // pred_fallthru
    _
  // Predicated region
  $region18: #{_lambda_.1} parent=0 // pred_check
    _
  $region19: #{_lambda_.1} parent=0 // pred_check_branch
    %274 = sbr.rel (0) target = $region21
  $region20: #{_lambda_.1} parent=0 // pred_region
    _
  $region21: #{_lambda_.1} parent=0 // pred_fallthru
    _

</llo_original>
